<compile_context>
chip_gen: v6e
topology: v6e:2x2x1
jax: 0.10.0
libtpu: 0.0.40
codegen_flags: <defaults>
</compile_context>

<pallas_src>
import functools

import jax
import jax.numpy as jnp
from jax.experimental import pallas as pl
from jax.experimental.pallas import tpu as pltpu

EPS = 1e-5
_MiB = 1024 * 1024


# ---------------------------------------------------------------------------
# Kernels
# ---------------------------------------------------------------------------
def _bn_single_pass_kernel(x_ref, gamma_ref, beta_ref, o_ref):
    """Whole batch resident: stats + normalize for one (N, td) column tile."""
    xf = x_ref[...].astype(jnp.float32)                       # (N, td)
    inv_n = 1.0 / xf.shape[0]
    s1 = jnp.sum(xf, axis=0, keepdims=True)                   # (1, td)
    s2 = jnp.sum(xf * xf, axis=0, keepdims=True)              # (1, td)
    mean = s1 * inv_n
    # One-pass variance (E[x^2] - mean^2), f32 accumulation, clamped at 0.
    # Slightly less robust than the diff form when |mean| >> std, but saves a
    # full (N, td) traversal + temporary (matters once HBM BW rises on v7x).
    var = jnp.maximum(s2 * inv_n - mean * mean, 0.0)
    scale = jax.lax.rsqrt(var + EPS) * gamma_ref[...]          # (1, td)
    shift = beta_ref[...] - mean * scale                       # (1, td)
    o_ref[...] = (xf * scale + shift).astype(o_ref.dtype)


def _bn_stats_kernel(x_ref, gamma_ref, beta_ref, stat_ref, *, n_total, tile_n):
    """Large-N pass 1: accumulate sum/sumsq across N tiles; finalize to fused
    (scale, shift) rows on the last N tile."""
    i = pl.program_id(1)                                       # N-tile index (last axis)

    @pl.when(i == 0)
    def _init():
        stat_ref[...] = jnp.zeros_like(stat_ref)

    xf = x_ref[...].astype(jnp.float32)                        # (tn, td)
    # Mask rows of the ragged last N tile so garbage rows never reach the sums.
    row = jax.lax.broadcasted_iota(jnp.int32, xf.shape, 0) + i * tile_n
    xf = jnp.where(row < n_total, xf, 0.0)
    s1 = jnp.sum(xf, axis=0, keepdims=True)                    # (1, td)
    s2 = jnp.sum(xf * xf, axis=0, keepdims=True)               # (1, td)
    stat_ref[...] += jnp.concatenate([s1, s2], axis=0)         # (2, td)

    @pl.when(i == pl.num_programs(1) - 1)
    def _finalize():
        inv_n = 1.0 / n_total
        s = stat_ref[...]
        mean = s[0:1, :] * inv_n
        var = jnp.maximum(s[1:2, :] * inv_n - mean * mean, 0.0)
        scale = jax.lax.rsqrt(var + EPS) * gamma_ref[...]
        shift = beta_ref[...] - mean * scale
        stat_ref[...] = jnp.concatenate([scale, shift], axis=0)


def _bn_apply_kernel(x_ref, stat_ref, o_ref):
    """Large-N pass 2: y = x * scale + shift."""
    s = stat_ref[...]                                          # (2, td) f32
    xf = x_ref[...].astype(jnp.float32)
    o_ref[...] = (xf * s[0:1, :] + s[1:2, :]).astype(o_ref.dtype)


# ---------------------------------------------------------------------------
# VMEM-budget-aware tile sizing
# ---------------------------------------------------------------------------
def _vmem_capacity_bytes():
    try:
        cap = int(pltpu.get_tpu_info().vmem_capacity_bytes)
        if cap > 0:
            return cap
    except Exception:
        pass
    return 64 * _MiB  # conservative fallback: v7x physical VMEM per core


def _single_pass_bytes(n, td, in_bytes, out_bytes):
    # Double-buffered x/y tiles + gamma/beta rows + in-kernel f32 temporaries
    # (upcast x, x*x, pre-cast result).
    return (2 * n * td * (in_bytes + out_bytes)
            + 2 * 2 * td * 4
            + 3 * n * td * 4)


def _two_pass_bytes(tn, td, in_bytes, out_bytes):
    # Pass 1 (stats): x tile (x2) + param rows (x2) + resident stats + f32 temps.
    stats = (2 * tn * td * in_bytes + 2 * 2 * td * 4 + 2 * 2 * td * 4
             + 3 * tn * td * 4)
    # Pass 2 (apply): x/y tiles (x2) + stats block (x2) + f32 temp.
    apply = (2 * tn * td * (in_bytes + out_bytes) + 2 * 2 * td * 4
             + 2 * tn * td * 4)
    return max(stats, apply)


def _pick_td_single(n, d, in_bytes, out_bytes, budget):
    if d <= 128:
        return d
    lanes = pl.cdiv(d, 128)
    per128 = _single_pass_bytes(n, 128, in_bytes, out_bytes)
    budget_units = max(1, budget // max(1, per128))
    # Target <= ~8 MiB per (N, td) input tile: big enough to hide the
    # ~0.35 us/step overhead, small enough to keep several grid steps alive
    # (pipelining + v7x megacore sharding).
    target_units = max(1, (8 * _MiB) // max(1, n * 128 * max(in_bytes, 4)))
    units = max(1, min(budget_units, target_units, lanes))
    return 128 * units


def _pick_td_two_pass(d):
    if d <= 128:
        return d
    return 128 * min(pl.cdiv(d, 128), 8)  # up to 1024 lanes per tile


def _pick_tn(n, td, in_bytes, out_bytes, budget):
    if n <= 8:
        return n
    rows = pl.cdiv(n, 8)
    per8 = _two_pass_bytes(8, td, in_bytes, out_bytes)
    budget_units = max(1, budget // max(1, per8))
    target_units = max(1, (8 * _MiB) // max(1, 8 * td * max(in_bytes, 4)))
    units = max(1, min(budget_units, target_units, rows))
    return 8 * units


# ---------------------------------------------------------------------------
# Wrapper
# ---------------------------------------------------------------------------
def normalize_batchnorm1d(x, gamma, beta, *,
                          force_two_pass=False, tile_n=None, tile_d=None):
    """Training-mode BatchNorm1d forward for 2-D input (N, D)."""
    N, D = x.shape
    in_bytes = jnp.dtype(x.dtype).itemsize
    out_bytes = in_bytes

    gamma2d = gamma.astype(jnp.float32).reshape(1, D)
    beta2d = beta.astype(jnp.float32).reshape(1, D)

    cap = _vmem_capacity_bytes()
    budget = int(cap * 0.75)  # headroom for compiler scratch / pipeline state

    td_min = D if D <= 128 else 128
    single_fits = _single_pass_bytes(N, td_min, in_bytes, out_bytes) <= budget

    if single_fits and not force_two_pass:
        td = tile_d if tile_d is not None else _pick_td_single(
            N, D, in_bytes, out_bytes, budget)
        need = _single_pass_bytes(N, td, in_bytes, out_bytes)
        vmem_limit = int(min(max(2 * need, 16 * _MiB), cap - 2 * _MiB))
        return pl.pallas_call(
            _bn_single_pass_kernel,
            out_shape=jax.ShapeDtypeStruct((N, D), x.dtype),
            grid_spec=pl.GridSpec(
                grid=(pl.cdiv(D, td),),
                in_specs=[
                    pl.BlockSpec((N, td), lambda j: (0, j)),
                    pl.BlockSpec((1, td), lambda j: (0, j)),
                    pl.BlockSpec((1, td), lambda j: (0, j)),
                ],
                out_specs=pl.BlockSpec((N, td), lambda j: (0, j)),
            ),
            compiler_params=pltpu.CompilerParams(
                dimension_semantics=("parallel",),
                vmem_limit_bytes=vmem_limit,
            ),
        )(x, gamma2d, beta2d)

    # --------------------- large-N two-pass path ---------------------
    td = tile_d if tile_d is not None else _pick_td_two_pass(D)
    tn = tile_n if tile_n is not None else _pick_tn(N, td, in_bytes, out_bytes, budget)
    d_tiles = pl.cdiv(D, td)
    n_tiles = pl.cdiv(N, tn)
    need = _two_pass_bytes(tn, td, in_bytes, out_bytes)
    vmem_limit = int(min(max(2 * need, 16 * _MiB), cap - 2 * _MiB))

    # Pass 1: fused (scale, shift) per feature, accumulated across N tiles.
    stats = pl.pallas_call(
        functools.partial(_bn_stats_kernel, n_total=N, tile_n=tn),
        out_shape=jax.ShapeDtypeStruct((2, D), jnp.float32),
        grid_spec=pl.GridSpec(
            grid=(d_tiles, n_tiles),
            in_specs=[
                pl.BlockSpec((tn, td), lambda j, i: (i, j)),
                pl.BlockSpec((1, td), lambda j, i: (0, j)),
                pl.BlockSpec((1, td), lambda j, i: (0, j)),
            ],
            out_specs=pl.BlockSpec((2, td), lambda j, i: (0, j)),
        ),
        compiler_params=pltpu.CompilerParams(
            dimension_semantics=("parallel", "arbitrary"),
            vmem_limit_bytes=vmem_limit,
        ),
    )(x, gamma2d, beta2d)

    # Pass 2: y = x * scale + shift (fully parallel over both tile axes).
    return pl.pallas_call(
        _bn_apply_kernel,
        out_shape=jax.ShapeDtypeStruct((N, D), x.dtype),
        grid_spec=pl.GridSpec(
            grid=(d_tiles, n_tiles),
            in_specs=[
                pl.BlockSpec((tn, td), lambda j, i: (i, j)),
                pl.BlockSpec((2, td), lambda j, i: (0, j)),
            ],
            out_specs=pl.BlockSpec((tn, td), lambda j, i: (i, j)),
        ),
        compiler_params=pltpu.CompilerParams(
            dimension_semantics=("parallel", "parallel"),
            vmem_limit_bytes=vmem_limit,
        ),
    )(x, stats)


# ---------------------------------------------------------------------------
# Reference + demo
# ---------------------------------------------------------------------------
def _reference(x, gamma, beta):
    x32 = x.astype(jnp.float32)
    mean = jnp.mean(x32, axis=0, keepdims=True)
    var = jnp.mean((x32 - mean) ** 2, axis=0, keepdims=True)
    y = (x32 - mean) / jnp.sqrt(var + EPS) * gamma.reshape(1, -1) + beta.reshape(1, -1)
    return y.astype(x.dtype)


if __name__ == "__main__":
    key = jax.random.PRNGKey(0)
    k0, k1, k2, k3 = jax.random.split(key, 4)

    # Normalize(dim=32, norm='batch') applied to a (batch=8, dim=32) input.
    # PyTorch BatchNorm1d default parameter init: weight=1, bias=0.
    N, D = 8, 32
    x = jax.random.normal(k0, (N, D), dtype=jnp.float32)
    gamma = jnp.ones((D,), dtype=jnp.float32)
    beta = jnp.zeros((D,), dtype=jnp.float32)

    y = jax.block_until_ready(normalize_batchnorm1d(x, gamma, beta))
    y_ref = _reference(x, gamma, beta)
    assert y.shape == (N, D)
    assert jnp.allclose(y, y_ref, atol=1e-5, rtol=1e-5), "single-pass mismatch"

    # Also exercise the large-N two-pass path with ragged tiles on both axes
    # (N=20 with tn=8, D=200 with td=128) and non-trivial gamma/beta.
    N2, D2 = 20, 200
    x2 = jax.random.normal(k1, (N2, D2), dtype=jnp.float32)
    gamma2 = 1.0 + 0.1 * jax.random.normal(k2, (D2,), dtype=jnp.float32)
    beta2 = 0.1 * jax.random.normal(k3, (D2,), dtype=jnp.float32)
    y2 = jax.block_until_ready(
        normalize_batchnorm1d(x2, gamma2, beta2,
                              force_two_pass=True, tile_n=8, tile_d=128))
    y2_ref = _reference(x2, gamma2, beta2)
    assert y2.shape == (N2, D2)
    assert jnp.allclose(y2, y2_ref, atol=1e-5, rtol=1e-5), "two-pass mismatch"

    # TODO(synk): optional bf16 fast path (bf16 FMA + store on v6e/v7x only).
    print("KERNEL_OK")
</pallas_src>

<mosaic_0001>
module attributes {stable_mosaic.version = 11 : i64} {
  func.func @_bn_single_pass_kernel(%arg0: i32, %arg1: memref<8x32xf32, #tpu.memory_space<vmem>>, %arg2: memref<1x32xf32, #tpu.memory_space<vmem>>, %arg3: memref<1x32xf32, #tpu.memory_space<vmem>>, %arg4: memref<8x32xf32, #tpu.memory_space<vmem>>) attributes {dimension_semantics = [#tpu.dimension_semantics<parallel>], iteration_bounds = array<i64: 1>, scalar_prefetch = 0 : i64, scratch_operands = 0 : i64, tpu.core_type = #tpu.core_type<tc>, window_params = [{transform_indices = @transform_0, window_bounds = array<i64: 8, 32>}, {transform_indices = @transform_1, window_bounds = array<i64: 1, 32>}, {transform_indices = @transform_2, window_bounds = array<i64: 1, 32>}, {transform_indices = @transform_3, window_bounds = array<i64: 8, 32>}]} {
    %c0 = arith.constant 0 : index
    %c0_0 = arith.constant 0 : index
    %0 = vector.load %arg1[%c0, %c0_0] : memref<8x32xf32, #tpu.memory_space<vmem>>, vector<8x32xf32>
    %cst = arith.constant dense<0.000000e+00> : vector<32xf32>
    %1 = vector.multi_reduction <add>, %0, %cst [0] : vector<8x32xf32> to vector<32xf32>
    %2 = vector.shape_cast %1 : vector<32xf32> to vector<1x32xf32>
    %3 = arith.mulf %0, %0 : vector<8x32xf32>
    %cst_1 = arith.constant dense<0.000000e+00> : vector<32xf32>
    %4 = vector.multi_reduction <add>, %3, %cst_1 [0] : vector<8x32xf32> to vector<32xf32>
    %5 = vector.shape_cast %4 : vector<32xf32> to vector<1x32xf32>
    %cst_2 = arith.constant 1.250000e-01 : f32
    %6 = vector.broadcast %cst_2 : f32 to vector<1x32xf32>
    %7 = arith.mulf %2, %6 : vector<1x32xf32>
    %cst_3 = arith.constant 1.250000e-01 : f32
    %8 = vector.broadcast %cst_3 : f32 to vector<1x32xf32>
    %9 = arith.mulf %5, %8 : vector<1x32xf32>
    %10 = arith.mulf %7, %7 : vector<1x32xf32>
    %11 = arith.subf %9, %10 : vector<1x32xf32>
    %cst_4 = arith.constant 0.000000e+00 : f32
    %12 = vector.broadcast %cst_4 : f32 to vector<1x32xf32>
    %13 = arith.maximumf %11, %12 : vector<1x32xf32>
    %cst_5 = arith.constant 9.99999974E-6 : f32
    %14 = vector.broadcast %cst_5 : f32 to vector<1x32xf32>
    %15 = arith.addf %13, %14 : vector<1x32xf32>
    %16 = math.rsqrt %15 : vector<1x32xf32>
    %c0_6 = arith.constant 0 : index
    %c0_7 = arith.constant 0 : index
    %17 = vector.load %arg2[%c0_6, %c0_7] : memref<1x32xf32, #tpu.memory_space<vmem>>, vector<1x32xf32>
    %18 = arith.mulf %16, %17 : vector<1x32xf32>
    %c0_8 = arith.constant 0 : index
    %c0_9 = arith.constant 0 : index
    %19 = vector.load %arg3[%c0_8, %c0_9] : memref<1x32xf32, #tpu.memory_space<vmem>>, vector<1x32xf32>
    %20 = arith.mulf %7, %18 : vector<1x32xf32>
    %21 = arith.subf %19, %20 : vector<1x32xf32>
    %22 = vector.broadcast %18 : vector<1x32xf32> to vector<8x32xf32>
    %23 = arith.mulf %0, %22 : vector<8x32xf32>
    %24 = vector.broadcast %21 : vector<1x32xf32> to vector<8x32xf32>
    %25 = arith.addf %23, %24 : vector<8x32xf32>
    %c0_10 = arith.constant 0 : index
    %c0_11 = arith.constant 0 : index
    %26 = vector.load %arg4[%c0_10, %c0_11] : memref<8x32xf32, #tpu.memory_space<vmem>>, vector<8x32xf32>
    tpu.vector_store %arg4[%c0_10, %c0_11], %25 {strides = array<i32>} : memref<8x32xf32, #tpu.memory_space<vmem>>, vector<8x32xf32>,
    return
  }
  func.func @transform_0(%arg0: i32) -> (i32, i32) {
    %c0_i32 = arith.constant 0 : i32
    %c0_i32_0 = arith.constant 0 : i32
    return %c0_i32, %arg0 : i32, i32
  }
  func.func @transform_1(%arg0: i32) -> (i32, i32) {
    %c0_i32 = arith.constant 0 : i32
    %c0_i32_0 = arith.constant 0 : i32
    return %c0_i32, %arg0 : i32, i32
  }
  func.func @transform_2(%arg0: i32) -> (i32, i32) {
    %c0_i32 = arith.constant 0 : i32
    %c0_i32_0 = arith.constant 0 : i32
    return %c0_i32, %arg0 : i32, i32
  }
  func.func @transform_3(%arg0: i32) -> (i32, i32) {
    %c0_i32 = arith.constant 0 : i32
    %c0_i32_0 = arith.constant 0 : i32
    return %c0_i32, %arg0 : i32, i32
  }
}

</mosaic_0001>

<llo_original>
// kernel: tpu_custom_call.1
$region0: #{tpu_custom_call.1}
  #allocation0 [shape = 'u32[]', space=smem, size = 0x4, offset = 0x4, fixed_abs, tag = 'smem constant byte address 0x4 - core index']
  #allocation1 [shape = 'u32[144,128]{1,0:T(1,128)}', space=vmem, size = 0x12000, scoped, tag = 'internal scratch']
  %s0 = inlined_call_operand.hbm [shape: f32[8,32], index: 0, kind: input, shape index: {}]
  %s1 = inlined_call_operand.vmem [shape: f32[1,32], index: 1, kind: input, shape index: {}]
  %s2 = inlined_call_operand.vmem [shape: f32[1,32], index: 2, kind: input, shape index: {}]
  %s3 = inlined_call_operand.hbm [shape: f32[8,32], index: 3, kind: output, shape index: {}]
  %s4 = sld [smem:[#allocation0]]
  $region26: #{tpu_custom_call.1} parent=0
    _
  %s6 = ssub.s32 1, %s4
  %s7 = scalar_select 0, %s6, %s4
  $region1: #{tpu_custom_call.1} parent=0
    #allocation2 [shape = 'u8[4096]{0}', space=vmem, size = 0x1000, scoped, tag = 'input window, operand 0, single buffered']
    #allocation3 [shape = 's32[1]{0}', space=sflag, size = 0x4, scoped, tag = 'scoped memory for tpu_custom_call.1']
    #allocation4 [shape = 's32[1]{0}', space=sflag, size = 0x4, scoped, tag = 'scoped memory for tpu_custom_call.1']
    #allocation5 [shape = 'u8[4096]{0}', space=vmem, size = 0x1000, scoped, tag = 'output window, operand 0, single buffered']
    %8 = vsyncpa [#allocation3], 0
    %9 = vsyncpa [#allocation4], 0
    // Predicated region
    $region2: #{tpu_custom_call.1} parent=1 // pred_check
      _
    $region3: #{tpu_custom_call.1} parent=1 // pred_check_branch
      %11 = sbr.rel (0) target = $region5
    $region4: #{tpu_custom_call.1} parent=1 // pred_region
      %s13 = ssub.s32 128, 128
      %14 = vsyncadd [#allocation3], %s13
      %s16 = sshll.u32 [#allocation2], 4
      %s17 = int_to_ptr.vmem [resolvable:$true] %s16
      %19 = dma.hbm_to_vmem [thread:$0]  %s0, 128, %s17, [#allocation3]
    $region5: #{tpu_custom_call.1} parent=1 // pred_fallthru
      _
    // Predicated region
    $region6: #{tpu_custom_call.1} parent=1 // pred_check
      _
    $region7: #{tpu_custom_call.1} parent=1 // pred_check_branch
      %21 = sbr.rel (0) target = $region9
    $region8: #{tpu_custom_call.1} parent=1 // pred_region
      _
    $region9: #{tpu_custom_call.1} parent=1 // pred_fallthru
      _
    // Predicated region
    $region10: #{tpu_custom_call.1} parent=1 // pred_check
      _
    $region11: #{tpu_custom_call.1} parent=1 // pred_check_branch
      %23 = sbr.rel (0) target = $region13
    $region12: #{tpu_custom_call.1} parent=1 // pred_region
      _
    $region13: #{tpu_custom_call.1} parent=1 // pred_fallthru
      _
    // Predicated region
    $region14: #{tpu_custom_call.1} parent=1 // pred_check
      _
    $region15: #{tpu_custom_call.1} parent=1 // pred_check_branch
      %25 = sbr.rel (0) target = $region17
    $region16: #{tpu_custom_call.1} parent=1 // pred_region
      %26 = dma.done [#allocation3], 128
    $region17: #{tpu_custom_call.1} parent=1 // pred_fallthru
      _
    %v27 = vld [vmem:[#allocation2] sm:$0xff]
    %vm28 = vcmask 261120
    %v29 = vsel %vm28, %v27, 0.0
    %v30 = vrot.slane %v29, 4
    %v31 = vadd.f32 %v29, %v30
    %v32 = vrot.slane %v31, 2
    %v33 = vadd.f32 %v31, %v32
    %v34 = vrot.slane %v33, 1
    %v35 = vadd.f32 %v33, %v34
    %v36 = vmul.f32 %v27, %v27
    %v37 = vsel %vm28, %v36, 0.0
    %v38 = vrot.slane %v37, 4
    %v39 = vadd.f32 %v37, %v38
    %v40 = vrot.slane %v39, 2
    %v41 = vadd.f32 %v39, %v40
    %v42 = vrot.slane %v41, 1
    %v43 = vadd.f32 %v41, %v42
    %v44 = vmul.f32 %v35, 0.125
    %v45 = vmul.f32 %v43, 0.125
    %v46 = vmul.f32 %v44, %v44
    %v47 = vsub.f32 %v45, %v46
    %v48 = vmax.f32 %v47, 0.0
    %v49 = vadd.f32 %v48, 1e-05
    %v50 = vrsqrt.pop %v49
    %v51 = vld [vmem:[%s1] sm:$0x1]
    %v52 = vmul.f32 %v50, %v51
    %v53 = vld [vmem:[%s2] sm:$0x1]
    %v54 = vmul.f32 %v44, %v52
    %v55 = vsub.f32 %v53, %v54
    %v56 = vlaneseq
    %v57 = vshrl.u32 %v56, 7
    %v58 = vsub.s32 0, %v57
    %v59 = vrot.slane %v52, %v58
    %v60 = vmul.f32 %v27, %v59
    %v62 = vlaneseq
    %v63 = vshrl.u32 %v62, 7
    %v64 = vsub.s32 0, %v63
    %v65 = vrot.slane %v55, %v64
    %v67 = vadd.f32 %v60, %v65
    %68 = vst.msk [vmem:[#allocation5] sm:$0xff] %vm28, %v67
    // Predicated region
    $region18: #{tpu_custom_call.1} parent=1 // pred_check
      _
    $region19: #{tpu_custom_call.1} parent=1 // pred_check_branch
      %70 = sbr.rel (0) target = $region21
    $region20: #{tpu_custom_call.1} parent=1 // pred_region
      %s72 = ssub.s32 128, 128
      %73 = vsyncadd [#allocation4], %s72
      %s75 = sshll.u32 [#allocation5], 4
      %s76 = int_to_ptr.vmem [resolvable:$true] %s75
      %78 = dma.vmem_to_hbm [thread:$0]  %s76, 128, %s3, [#allocation4]
    $region21: #{tpu_custom_call.1} parent=1 // pred_fallthru
      _
    // Predicated region
    $region22: #{tpu_custom_call.1} parent=1 // pred_check
      _
    $region23: #{tpu_custom_call.1} parent=1 // pred_check_branch
      %80 = sbr.rel (0) target = $region25
    $region24: #{tpu_custom_call.1} parent=1 // pred_region
      %81 = dma.done [#allocation4], 128
    $region25: #{tpu_custom_call.1} parent=1 // pred_fallthru
      _
    %82 = vsyncpa [#allocation3], 1
    %83 = vsyncpa [#allocation4], 1

</llo_original>
